<compile_context>
chip_gen: v7x
topology: tpu7x:2x2x1
jax: 0.10.0
libtpu: 0.0.40
codegen_flags: <defaults>
</compile_context>

<pallas_src>
import functools
import math

import jax
import jax.numpy as jnp
from jax.experimental import pallas as pl
from jax.experimental.pallas import tpu as pltpu


def _pick_spatial_tile(hw, ncout, itemsize, max_block_bytes=4 * 1024 * 1024):
    """Pick the spatial (lane) tile T for a (1, ncout, T) output block.

    T is either the full extent `hw`, or the largest multiple-of-128 divisor of
    `hw` keeping the output block under `max_block_bytes` (v7x-safe sizing).
    """
    if ncout * hw * itemsize <= max_block_bytes or hw % 128 != 0:
        # Small enough, or hw not 128-divisible: use full-dim block (always legal).
        return hw
    best = 128
    t = 128
    while t <= hw:
        if hw % t == 0 and ncout * t * itemsize <= max_block_bytes:
            best = t
        t += 128
    return best


def _zero_pad_kernel(ncin, x_ref, o_ref):
    # x_ref: (1, ncin, T)   o_ref: (1, ncout, T)
    ncout = o_ref.shape[1]
    t = o_ref.shape[2]
    o_ref[:, :ncin, :] = x_ref[...].astype(o_ref.dtype)
    if ncout > ncin:  # static check; zeros are generated in VMEM (no HBM read)
        o_ref[:, ncin:, :] = jnp.zeros((1, ncout - ncin, t), o_ref.dtype)


def _clone_kernel(ncin, rep, scale, x_ref, o_ref):
    # x_ref: (1, ncin, T)   o_ref: (1, rep*ncin, T)
    v = (x_ref[...].astype(jnp.float32) * scale).astype(o_ref.dtype)
    # Input is loaded once; each replica is a static-sliced VMEM store.
    for r in range(rep):
        o_ref[:, r * ncin:(r + 1) * ncin, :] = v


def padding_channels(x, ncout, ncin=3, mode="zero"):
    """Pallas TPU implementation of PaddingChannels.forward.

    x: (B, ncin, H, W) array (NCHW).
      mode == 'zero' : (B, ncout, H, W) float32 (matches torch.zeros default),
                       out[:, :ncin] == x, remaining channels zero.
      mode == 'clone': (B, ncout, H, W) in x.dtype, channels tiled ncout//ncin
                       times and scaled by 1/sqrt(ncout // ncin).
    """
    B, C, H, W = x.shape
    assert C == ncin, f"expected {ncin} input channels, got {C}"
    hw = H * W
    x2 = x.reshape(B, ncin, hw)  # pure layout plumbing; lane-dense last dim

    if mode == "zero":
        # torch.zeros(...) in the reference uses the default (float32) dtype.
        out_dtype = jnp.float32
        kernel = functools.partial(_zero_pad_kernel, ncin)
    elif mode == "clone":
        rep = ncout // ncin
        assert rep * ncin == ncout, "ncout must be a multiple of ncin for clone mode"
        out_dtype = x.dtype
        scale = 1.0 / math.sqrt(rep)
        kernel = functools.partial(_clone_kernel, ncin, rep, scale)
    else:
        raise ValueError(f"unknown mode: {mode}")

    T = _pick_spatial_tile(hw, ncout, jnp.dtype(out_dtype).itemsize)
    grid = (B, hw // T)

    in_spec = pl.BlockSpec((1, ncin, T), lambda b, t: (b, 0, t))
    out_spec = pl.BlockSpec((1, ncout, T), lambda b, t: (b, 0, t))

    out = pl.pallas_call(
        kernel,
        out_shape=jax.ShapeDtypeStruct((B, ncout, hw), out_dtype),
        grid=grid,
        in_specs=[in_spec],
        out_specs=out_spec,
        compiler_params=pltpu.CompilerParams(
            dimension_semantics=("parallel", "parallel")
        ),
    )(x2)
    return out.reshape(B, ncout, H, W)


if __name__ == "__main__":
    key = jax.random.PRNGKey(0)
    B, ncin, H, W = 2, 3, 16, 16
    ncout = 12
    x = jax.random.normal(key, (B, ncin, H, W), dtype=jnp.float32)

    # zero mode (module default)
    out_zero = padding_channels(x, ncout, ncin=ncin, mode="zero")
    out_zero = jax.block_until_ready(out_zero)
    ref_zero = jnp.zeros((B, ncout, H, W), jnp.float32).at[:, :ncin].set(x)
    assert out_zero.shape == (B, ncout, H, W)
    assert out_zero.dtype == jnp.float32
    assert jnp.allclose(out_zero, ref_zero, atol=1e-6), "zero mode mismatch"

    # clone mode
    out_clone = padding_channels(x, ncout, ncin=ncin, mode="clone")
    out_clone = jax.block_until_ready(out_clone)
    rep = ncout // ncin
    ref_clone = jnp.tile(x, (1, rep, 1, 1)) / math.sqrt(rep)
    assert out_clone.shape == (B, ncout, H, W)
    assert out_clone.dtype == x.dtype
    assert jnp.allclose(out_clone, ref_clone, atol=1e-6), "clone mode mismatch"

    print("KERNEL_OK")
</pallas_src>

<mosaic_0001>
module attributes {stable_mosaic.version = 11 : i64} {
  func.func @_zero_pad_kernel(%arg0: i32, %arg1: i32, %arg2: memref<1x3x256xf32, #tpu.memory_space<vmem>>, %arg3: memref<1x12x256xf32, #tpu.memory_space<vmem>>) attributes {dimension_semantics = [#tpu.dimension_semantics<parallel>, #tpu.dimension_semantics<parallel>], iteration_bounds = array<i64: 2, 1>, scalar_prefetch = 0 : i64, scratch_operands = 0 : i64, tpu.core_type = #tpu.core_type<tc>, window_params = [{transform_indices = @transform_0, window_bounds = array<i64: 1, 3, 256>}, {transform_indices = @transform_1, window_bounds = array<i64: 1, 12, 256>}]} {
    %c0 = arith.constant 0 : index
    %c0_0 = arith.constant 0 : index
    %c0_1 = arith.constant 0 : index
    %0 = vector.load %arg2[%c0, %c0_0, %c0_1] : memref<1x3x256xf32, #tpu.memory_space<vmem>>, vector<1x3x256xf32>
    %c0_2 = arith.constant 0 : index
    %c0_3 = arith.constant 0 : index
    %c0_4 = arith.constant 0 : index
    %1 = vector.load %arg3[%c0_2, %c0_3, %c0_4] : memref<1x12x256xf32, #tpu.memory_space<vmem>>, vector<1x3x256xf32>
    tpu.vector_store %arg3[%c0_2, %c0_3, %c0_4], %0 {strides = array<i32>} : memref<1x12x256xf32, #tpu.memory_space<vmem>>, vector<1x3x256xf32>,
    %cst = arith.constant 0.000000e+00 : f32
    %2 = vector.broadcast %cst : f32 to vector<1x9x256xf32>
    %c0_5 = arith.constant 0 : index
    %c3 = arith.constant 3 : index
    %c0_6 = arith.constant 0 : index
    %3 = vector.load %arg3[%c0_5, %c3, %c0_6] : memref<1x12x256xf32, #tpu.memory_space<vmem>>, vector<1x9x256xf32>
    tpu.vector_store %arg3[%c0_5, %c3, %c0_6], %2 {strides = array<i32>} : memref<1x12x256xf32, #tpu.memory_space<vmem>>, vector<1x9x256xf32>,
    return
  }
  func.func @transform_0(%arg0: i32, %arg1: i32) -> (i32, i32, i32) {
    %c0_i32 = arith.constant 0 : i32
    %c0_i32_0 = arith.constant 0 : i32
    return %arg0, %c0_i32, %arg1 : i32, i32, i32
  }
  func.func @transform_1(%arg0: i32, %arg1: i32) -> (i32, i32, i32) {
    %c0_i32 = arith.constant 0 : i32
    %c0_i32_0 = arith.constant 0 : i32
    return %arg0, %c0_i32, %arg1 : i32, i32, i32
  }
}

</mosaic_0001>

<llo_original>
// kernel: tpu_custom_call.1
$region0: #{tpu_custom_call.1}
  #allocation0 [shape = 'u32[]', space=smem, size = 0x4, offset = 0x4, fixed_abs, tag = 'smem constant byte address 0x4 - core index']
  #allocation1 [shape = 'u32[144,128]{1,0:T(1,128)}', space=vmem, size = 0x12000, scoped, tag = 'internal scratch']
  %s0 = inlined_call_operand.vmem [shape: f32[2,3,256], index: 0, kind: input, shape index: {}]
  %s1 = inlined_call_operand.vmem [shape: f32[2,12,256], index: 1, kind: output, shape index: {}]
  %s2 = sld [smem:[#allocation0]]
  $region37: #{tpu_custom_call.1} parent=0
    _
  %s4 = ssub.s32 1, %s2
  %s5 = scalar_select 0, %s4, %s2
  loop: start=0, step=1, limit=4
  $region2: #{tpu_custom_call.1} parent=0 // loop_pre_header
    _
  $region3: #{tpu_custom_call.1} parent=0 // loop_header
    %s7 = sphi 0, %s11
    %p8 = scmp.ge.s32.totalorder %s7, 4
    %s14 = sphi 0, %s26
    %s15 = sphi 0, %s22
    %s16 = sphi 0, %s14
    %s17 = sphi 0, %s15
    %s18 = sphi 0, %s16
    %s19 = sphi 0, %s17
    %s31 = sphi 0, %s33
    %s34 = sphi 0, %s31
    %s35 = sphi 0, %s34
    %s51 = sphi 0, %s35
    %s59 = sphi 0, %s61
    %s62 = sphi 0, %s59
    %s63 = sphi 0, %s62
    %s79 = sphi 0, %s63
  $region4: #{tpu_custom_call.1} parent=0 // loop_header_branch
    %10 = sbr.rel (%p8) target = $region8
  $region5: #{tpu_custom_call.1} parent=0 // loop_body
    %s12 = ssub.s32 %s7, 1
    %s13 = ssub.s32 %s7, 2
    %s20 = sadd.s32 1, %s15
    %p21 = scmp.ge.s32.totalorder %s20, 1
    %s22 = scalar_select %p21, 0, %s20
    %s23 = sadd.s32 1, %s14
    %s24 = scalar_select %p21, %s23, %s14
    %p25 = scmp.ge.s32.totalorder %s24, 2
    %s26 = scalar_select %p25, 0, %s24
    %s27 = ssub.s32 %s14, %s26
    %s28 = ssub.s32 %s15, %s22
    %s29 = sor.u32 %s27, %s28
    %p30 = scmp.eq.s32.totalorder %s29, 0
    %s32 = sadd.s32 %s31, 1
    %s33 = scalar_select %p30, %s31, %s32
    %p36 = pneg %p30
    %p37 = scmp.eq.s32.totalorder %s7, 1
    %p38 = por %p36, %p37
    %p39 = scmp.ne.s32.totalorder %s31, %s34
    %p40 = scmp.eq.s32.totalorder %s7, 0
    %p41 = por %p39, %p40
    %p42 = scmp.ne.s32.totalorder %s31, %s34
    %p43 = scmp.eq.s32.totalorder %s12, 1
    %p44 = por %p42, %p43
    %p45 = scmp.ne.s32.totalorder %s34, %s35
    %p46 = scmp.eq.s32.totalorder %s12, 0
    %p47 = por %p45, %p46
    %p48 = scmp.ne.s32.totalorder %s34, %s35
    %p49 = scmp.eq.s32.totalorder %s13, 1
    %p50 = por %p48, %p49
    %p52 = scmp.ne.s32.totalorder %s35, %s51
    %p53 = scmp.eq.s32.totalorder %s13, 0
    %p54 = por %p52, %p53
    %s55 = ssub.s32 %s14, %s26
    %s56 = ssub.s32 %s15, %s22
    %s57 = sor.u32 %s55, %s56
    %p58 = scmp.eq.s32.totalorder %s57, 0
    %s60 = sadd.s32 %s59, 1
    %s61 = scalar_select %p58, %s59, %s60
    %p64 = pneg %p58
    %p65 = scmp.eq.s32.totalorder %s7, 1
    %p66 = por %p64, %p65
    %p67 = scmp.ne.s32.totalorder %s59, %s62
    %p68 = scmp.eq.s32.totalorder %s7, 0
    %p69 = por %p67, %p68
    %p70 = scmp.ne.s32.totalorder %s59, %s62
    %p71 = scmp.eq.s32.totalorder %s12, 1
    %p72 = por %p70, %p71
    %p73 = scmp.ne.s32.totalorder %s62, %s63
    %p74 = scmp.eq.s32.totalorder %s12, 0
    %p75 = por %p73, %p74
    %p76 = scmp.ne.s32.totalorder %s62, %s63
    %p77 = scmp.eq.s32.totalorder %s13, 1
    %p78 = por %p76, %p77
    %p80 = scmp.ne.s32.totalorder %s63, %s79
    %p81 = scmp.eq.s32.totalorder %s13, 0
    %p82 = por %p80, %p81
    %p83 = scmp.le.s32.totalorder 1, %s7
    %p84 = scmp.lt.s32.totalorder %s7, 3
    %p85 = pnand %p83, %p84
    %p86 = pneg %p85
    // Predicated region
    $region9: #{tpu_custom_call.1} parent=5 // pred_check
      _
    $region10: #{tpu_custom_call.1} parent=5 // pred_check_branch
      %88 = sbr.rel (%p85) target = $region12
    $region11: #{tpu_custom_call.1} parent=5 // pred_region
      %s89 = ssub.s32 %s7, 1
    $region12: #{tpu_custom_call.1} parent=5 // pred_fallthru
      _
    %p90 = scmp.lt.s32.totalorder %s7, 2
    // Predicated region
    $region13: #{tpu_custom_call.1} parent=5 // pred_check
      %p91 = pneg %p90
    $region14: #{tpu_custom_call.1} parent=5 // pred_check_branch
      %93 = sbr.rel (%p91) target = $region16
    $region15: #{tpu_custom_call.1} parent=5 // pred_region
      // Predicated region
      $region17: #{tpu_custom_call.1} parent=15 // pred_check
        %p94 = pneg %p41
      $region18: #{tpu_custom_call.1} parent=15 // pred_check_branch
        %96 = sbr.rel (%p94) target = $region20
      $region19: #{tpu_custom_call.1} parent=15 // pred_region
        %s97 = smul.u32 2, %s15
        %p98 = scmp.lt.s32.totalorder %s14, 1
        %s99 = scalar_select %p98, %s14, 1
        %p100 = scmp.lt.s32.totalorder %s97, 1
        %s101 = scalar_select %p100, %s97, 1
        %s102 = smul.addr %s99, 2
        %s103 = sadd.s32 %s101, %s102
        %s104 = smul.addr %s103, 4
        %s105 = scalar_lea.vmem %s0, %s104
        %s106 = smul.u32 2, %s15
      $region20: #{tpu_custom_call.1} parent=15 // pred_fallthru
        _
    $region16: #{tpu_custom_call.1} parent=5 // pred_fallthru
      _
    %p107 = scmp.le.s32.totalorder 1, %s7
    %p108 = scmp.lt.s32.totalorder %s7, 3
    %p109 = pnand %p107, %p108
    %p110 = pneg %p109
    // Predicated region
    $region21: #{tpu_custom_call.1} parent=5 // pred_check
      _
    $region22: #{tpu_custom_call.1} parent=5 // pred_check_branch
      %112 = sbr.rel (%p109) target = $region24
    $region23: #{tpu_custom_call.1} parent=5 // pred_region
      %s113 = ssub.s32 %s7, 1
      %s114 = smul.u32 2, %s17
      %p115 = scmp.lt.s32.totalorder %s16, 1
      %s116 = scalar_select %p115, %s16, 1
      %p117 = scmp.lt.s32.totalorder %s114, 1
      %s118 = scalar_select %p117, %s114, 1
      %s119 = smul.addr %s116, 2
      %s120 = sadd.s32 %s118, %s119
      %s121 = smul.addr %s120, 4
      %s122 = scalar_lea.vmem %s0, %s121
      %p123 = pneg %p47
      %p124 = pneg %p44
      %p125 = pneg %p75
      %p126 = pneg %p72
      %s127 = smul.u32 2, %s17
      %p128 = scmp.lt.s32.totalorder %s16, 1
      %s129 = scalar_select %p128, %s16, 1
      %p130 = scmp.lt.s32.totalorder %s127, 1
      %s131 = scalar_select %p130, %s127, 1
      %s132 = smul.addr %s129, 4
      %s133 = sadd.s32 %s131, %s132
      %s134 = smul.addr %s133, 8
      %s135 = scalar_lea.vmem %s1, %s134
      %s136 = smul.u32 2, %s17
      %p137 = scmp.lt.s32.totalorder %s16, 1
      %s138 = scalar_select %p137, %s16, 1
      %p139 = scmp.lt.s32.totalorder %s136, 1
      %s140 = scalar_select %p139, %s136, 1
      %s141 = smul.addr %s138, 2
      %s142 = sadd.s32 %s140, %s141
      %s143 = smul.addr %s142, 4
      %s144 = scalar_lea.vmem %s0, %s143
      %s145 = smul.u32 2, %s17
      %s146 = smul.u32 2, %s17
      %p147 = scmp.lt.s32.totalorder %s16, 1
      %s148 = scalar_select %p147, %s16, 1
      %p149 = scmp.lt.s32.totalorder %s146, 1
      %s150 = scalar_select %p149, %s146, 1
      %s151 = smul.addr %s148, 4
      %s152 = sadd.s32 %s150, %s151
      %s153 = smul.addr %s152, 8
      %s154 = scalar_lea.vmem %s1, %s153
      %s155 = smul.u32 2, %s17
      %v156 = vld [vmem:[%s144] sm:$0x77]
      %v158 = vcombine.high %v156, %v156
      %160 = vst [vmem:[%s154] sm:$0x7] %v156
      %161 = vst [vmem:[%s154 + $0x8] sm:$0x7] %v158
      %162 = vst [vmem:[%s154] sm:$0xf8] 0.0
      %163 = vst [vmem:[%s154 + $0x8] sm:$0xf8] 0.0
      %164 = vst [vmem:[%s154 + $0x10] sm:$0xf] 0.0
      %165 = vst [vmem:[%s154 + $0x18] sm:$0xf] 0.0
      %s166 = smul.u32 2, %s17
      %p167 = scmp.lt.s32.totalorder %s16, 1
      %s168 = scalar_select %p167, %s16, 1
      %p169 = scmp.lt.s32.totalorder %s166, 1
      %s170 = scalar_select %p169, %s166, 1
      %s171 = smul.addr %s168, 4
      %s172 = sadd.s32 %s170, %s171
      %s173 = smul.addr %s172, 8
      %s174 = scalar_lea.vmem %s1, %s173
      // Predicated region
      $region25: #{tpu_custom_call.1} parent=23 // pred_check
        %p175 = pneg %p72
      $region26: #{tpu_custom_call.1} parent=23 // pred_check_branch
        %177 = sbr.rel (%p175) target = $region28
      $region27: #{tpu_custom_call.1} parent=23 // pred_region
        %s178 = smul.u32 2, %s17
      $region28: #{tpu_custom_call.1} parent=23 // pred_fallthru
        _
    $region24: #{tpu_custom_call.1} parent=5 // pred_fallthru
      _
    %p179 = scmp.le.s32.totalorder 2, %s7
    // Predicated region
    $region29: #{tpu_custom_call.1} parent=5 // pred_check
      %p180 = pneg %p179
    $region30: #{tpu_custom_call.1} parent=5 // pred_check_branch
      %182 = sbr.rel (%p180) target = $region32
    $region31: #{tpu_custom_call.1} parent=5 // pred_region
      %s183 = ssub.s32 %s7, 2
      // Predicated region
      $region33: #{tpu_custom_call.1} parent=31 // pred_check
        %p184 = pneg %p78
      $region34: #{tpu_custom_call.1} parent=31 // pred_check_branch
        %186 = sbr.rel (%p184) target = $region36
      $region35: #{tpu_custom_call.1} parent=31 // pred_region
        %s187 = smul.u32 2, %s19
        %p188 = scmp.lt.s32.totalorder %s18, 1
        %s189 = scalar_select %p188, %s18, 1
        %p190 = scmp.lt.s32.totalorder %s187, 1
        %s191 = scalar_select %p190, %s187, 1
        %s192 = smul.addr %s189, 4
        %s193 = sadd.s32 %s191, %s192
        %s194 = smul.addr %s193, 8
        %s195 = scalar_lea.vmem %s1, %s194
      $region36: #{tpu_custom_call.1} parent=31 // pred_fallthru
        _
    $region32: #{tpu_custom_call.1} parent=5 // pred_fallthru
      _
  $region6: #{tpu_custom_call.1} parent=0 // loop_footer
    %s11 = sadd.s32 1, %s7
  $region7: #{tpu_custom_call.1} parent=0 // loop_footer_branch
    %6 = sbr.rel target = $region3
  $region8: #{tpu_custom_call.1} parent=0 // loop_exit
    _

</llo_original>
